<compile_context>
chip_gen: v7x
topology: tpu7x:2x2x1
jax: 0.10.0
libtpu: 0.0.40
codegen_flags: <defaults>
</compile_context>

<pallas_src>
import jax
import jax.numpy as jnp
from jax.experimental import pallas as pl
from jax.experimental.pallas import tpu as pltpu


LANES = 128
_TARGET_BLOCK_BYTES = 2 * 1024 * 1024  # ~2 MiB per operand per pipeline buffer


def _round_up(x: int, m: int) -> int:
    return (x + m - 1) // m * m


def _make_kernel(*, block_rows: int, m_rows: int, blocks_per_core: int,
                 mask_needed: bool):
    sub_blocks = block_rows // 8

    def kernel(x_ref, g_ref, out_ref, acc_ref):
        i = pl.program_id(1)

        @pl.when(i == 0)
        def _init():
            acc_ref[...] = jnp.zeros_like(acc_ref)

        x = x_ref[...].astype(jnp.float32)
        g = g_ref[...].astype(jnp.float32)
        p = jax.nn.sigmoid(x)          # EUP; slack on this HBM-bound kernel
        pg = p * g
        s = p + g

        def accumulate(pg_v, s_v):
            # (block_rows,128) -> (block_rows//8, 8, 128): tile-aligned reshape,
            # sum over the leading dim is pure VALU (no XLU fold in the hot loop).
            acc_ref[0] += jnp.sum(pg_v.reshape(sub_blocks, 8, LANES), axis=0)
            acc_ref[1] += jnp.sum(s_v.reshape(sub_blocks, 8, LANES), axis=0)

        if mask_needed:
            gb = pl.program_id(0) * blocks_per_core + i   # global row-block index
            row0 = gb * block_rows

            @pl.when(row0 + block_rows <= m_rows)
            def _full_block():                            # hot path: no masking
                accumulate(pg, s)

            @pl.when(row0 + block_rows > m_rows)
            def _ragged_block():                          # cold path: last / overflow block
                row = jax.lax.broadcasted_iota(jnp.int32, (block_rows, LANES), 0)
                valid = (row0 + row) < m_rows
                accumulate(jnp.where(valid, pg, 0.0), jnp.where(valid, s, 0.0))
        else:
            accumulate(pg, s)

        @pl.when(i == pl.num_programs(1) - 1)
        def _finalize():
            out_ref[0, 0] = acc_ref[0]
            out_ref[0, 1] = acc_ref[1]

    return kernel


def soft_dice_loss(logits: jax.Array, groundtruths: jax.Array) -> jax.Array:
    # TODO(synk): the PyTorch assert that groundtruths ∈ {0, 1} has no clean
    # in-kernel equivalent; the caller is trusted (this also makes the bf16
    # downcast below lossless).
    total = logits.size

    lf = logits.reshape(-1)                 # logits stay in their native dtype
    gf = groundtruths.reshape(-1)
    if jnp.dtype(gf.dtype).itemsize > 2:
        gf = gf.astype(jnp.bfloat16)        # lossless for a {0,1} mask; halves gt HBM stream

    main_len = (total // LANES) * LANES
    tail_len = total - main_len

    # <=127-element ragged tail: tiny pure-jnp correction, no full-array pad/copy.
    if tail_len:
        lt = lf[main_len:].astype(jnp.float32)
        gt = gf[main_len:].astype(jnp.float32)
        pt = jax.nn.sigmoid(lt)
        tail_pg = jnp.sum(pt * gt)
        tail_s = jnp.sum(pt + gt)
    else:
        tail_pg = jnp.float32(0.0)
        tail_s = jnp.float32(0.0)

    if main_len == 0:
        sum_pg, sum_s = tail_pg, tail_s
    else:
        m_rows = main_len // LANES
        if tail_len:
            lf = lf[:main_len]
            gf = gf[:main_len]
        lf = lf.reshape(m_rows, LANES)
        gf = gf.reshape(m_rows, LANES)

        itemsize = max(jnp.dtype(lf.dtype).itemsize, jnp.dtype(gf.dtype).itemsize)
        target_rows = max(8, _TARGET_BLOCK_BYTES // (LANES * itemsize))
        block_rows = min(target_rows, _round_up(m_rows, 8))
        num_blocks = pl.cdiv(m_rows, block_rows)

        # Leading "parallel" axis: splits row blocks across the two TensorCores
        # on v7x; on v5e/v6e (single TC) it is just a serial 2-pass outer loop.
        n_split = 2 if num_blocks > 1 else 1
        blocks_per_core = pl.cdiv(num_blocks, n_split)
        mask_needed = not (num_blocks * block_rows == m_rows
                           and n_split * blocks_per_core == num_blocks)

        kernel = _make_kernel(block_rows=block_rows, m_rows=m_rows,
                              blocks_per_core=blocks_per_core,
                              mask_needed=mask_needed)

        def data_map(c, i):
            # Clamp so overflow grid steps (odd num_blocks split across 2 cores)
            # re-read the last real block; their contribution is fully masked.
            return (jnp.minimum(c * blocks_per_core + i, num_blocks - 1), 0)

        partials = pl.pallas_call(
            kernel,
            out_shape=jax.ShapeDtypeStruct((n_split, 2, 8, LANES), jnp.float32),
            grid_spec=pltpu.PrefetchScalarGridSpec(
                num_scalar_prefetch=0,
                grid=(n_split, blocks_per_core),
                in_specs=[
                    pl.BlockSpec((block_rows, LANES), data_map),
                    pl.BlockSpec((block_rows, LANES), data_map),
                ],
                out_specs=pl.BlockSpec((1, 2, 8, LANES),
                                       lambda c, i: (c, 0, 0, 0)),
                scratch_shapes=[pltpu.VMEM((2, 8, LANES), jnp.float32)],
            ),
            compiler_params=pltpu.CompilerParams(
                dimension_semantics=("parallel", "arbitrary"),
            ),
        )(lf, gf)

        sum_pg = jnp.sum(partials[:, 0]) + tail_pg
        sum_s = jnp.sum(partials[:, 1]) + tail_s

    numerator = 2.0 * sum_pg + 1.0
    denominator = sum_s + 1.0
    return (1.0 - numerator / denominator).astype(jnp.float32)


def _reference(logits, groundtruths):
    p = jax.nn.sigmoid(logits.astype(jnp.float32))
    g = groundtruths.astype(jnp.float32)
    return 1.0 - (2.0 * jnp.sum(p * g) + 1.0) / (jnp.sum(p + g) + 1.0)


if __name__ == "__main__":
    key = jax.random.PRNGKey(0)
    k1, k2, k3, k4 = jax.random.split(key, 4)

    loss_fn = jax.jit(soft_dice_loss)

    # Test 1: NCHW f32, 128-divisible element count (pure hot path, no masking).
    logits = jax.random.normal(k1, (2, 4, 16, 16), dtype=jnp.float32)
    groundtruths = jax.random.bernoulli(k2, p=0.3, shape=(2, 4, 16, 16)).astype(
        jnp.float32
    )
    loss = jax.block_until_ready(loss_fn(logits, groundtruths))
    ref = _reference(logits, groundtruths)
    assert jnp.allclose(loss, ref, rtol=1e-5, atol=1e-5), (loss, ref)

    # Test 2: ragged element count + native bf16 logits (exercises the in-kernel
    # row masking, the wrapper tail correction, and the narrow-dtype stream).
    logits2 = jax.random.normal(k3, (2, 3, 17, 19), dtype=jnp.bfloat16)
    groundtruths2 = jax.random.bernoulli(k4, p=0.4, shape=(2, 3, 17, 19)).astype(
        jnp.float32
    )
    loss2 = jax.block_until_ready(loss_fn(logits2, groundtruths2))
    ref2 = _reference(logits2, groundtruths2)
    assert jnp.allclose(loss2, ref2, rtol=1e-5, atol=1e-5), (loss2, ref2)

    print("KERNEL_OK")
</pallas_src>

<mosaic_0001>
module attributes {stable_mosaic.version = 11 : i64} {
  func.func @kernel(%arg0: i32, %arg1: i32, %arg2: memref<16x128xf32, #tpu.memory_space<vmem>>, %arg3: memref<16x128xbf16, #tpu.memory_space<vmem>>, %arg4: memref<1x2x8x128xf32, #tpu.memory_space<vmem>>, %arg5: memref<2x8x128xf32, #tpu.memory_space<vmem>>) attributes {dimension_semantics = [#tpu.dimension_semantics<parallel>, #tpu.dimension_semantics<arbitrary>], iteration_bounds = array<i64: 1, 1>, scalar_prefetch = 0 : i64, scratch_operands = 1 : i64, tpu.core_type = #tpu.core_type<tc>, window_params = [{transform_indices = @transform_0, window_bounds = array<i64: 16, 128>}, {transform_indices = @transform_1, window_bounds = array<i64: 16, 128>}, {transform_indices = @transform_2, window_bounds = array<i64: 1, 2, 8, 128>}]} {
    %c0_i32 = arith.constant 0 : i32
    %0 = arith.cmpi eq, %arg1, %c0_i32 : i32
    %1 = arith.extui %0 : i1 to i32
    %c0_i32_0 = arith.constant 0 : i32
    %2 = arith.cmpi ne, %1, %c0_i32_0 : i32
    scf.if %2 {
      %cst_19 = arith.constant 0.000000e+00 : f32
      %32 = vector.broadcast %cst_19 : f32 to vector<2x8x128xf32>
      %c0_20 = arith.constant 0 : index
      %c0_21 = arith.constant 0 : index
      %c0_22 = arith.constant 0 : index
      %33 = vector.load %arg5[%c0_20, %c0_21, %c0_22] : memref<2x8x128xf32, #tpu.memory_space<vmem>>, vector<2x8x128xf32>
      tpu.vector_store %arg5[%c0_20, %c0_21, %c0_22], %32 {strides = array<i32>} : memref<2x8x128xf32, #tpu.memory_space<vmem>>, vector<2x8x128xf32>,
    } else {
    }
    %c0 = arith.constant 0 : index
    %c0_1 = arith.constant 0 : index
    %3 = vector.load %arg2[%c0, %c0_1] : memref<16x128xf32, #tpu.memory_space<vmem>>, vector<16x128xf32>
    %c0_2 = arith.constant 0 : index
    %c0_3 = arith.constant 0 : index
    %4 = vector.load %arg3[%c0_2, %c0_3] : memref<16x128xbf16, #tpu.memory_space<vmem>>, vector<16x128xbf16>
    %5 = arith.extf %4 : vector<16x128xbf16> to vector<16x128xf32>
    %6 = arith.negf %3 : vector<16x128xf32>
    %7 = math.exp %6 : vector<16x128xf32>
    %cst = arith.constant 1.000000e+00 : f32
    %8 = vector.broadcast %cst : f32 to vector<16x128xf32>
    %9 = arith.addf %8, %7 : vector<16x128xf32>
    %10 = arith.divf %8, %9 : vector<16x128xf32>
    %11 = arith.mulf %10, %5 : vector<16x128xf32>
    %12 = arith.addf %10, %5 : vector<16x128xf32>
    %c0_4 = arith.constant 0 : index
    %c0_5 = arith.constant 0 : index
    %c0_6 = arith.constant 0 : index
    %13 = vector.load %arg5[%c0_4, %c0_5, %c0_6] : memref<2x8x128xf32, #tpu.memory_space<vmem>>, vector<1x8x128xf32>
    %14 = vector.shape_cast %13 : vector<1x8x128xf32> to vector<8x128xf32>
    %15 = vector.shape_cast %11 : vector<16x128xf32> to vector<2x8x128xf32>
    %cst_7 = arith.constant dense<0.000000e+00> : vector<8x128xf32>
    %16 = vector.multi_reduction <add>, %15, %cst_7 [0] : vector<2x8x128xf32> to vector<8x128xf32>
    %17 = arith.addf %14, %16 : vector<8x128xf32>
    %c0_8 = arith.constant 0 : index
    %c0_9 = arith.constant 0 : index
    %c0_10 = arith.constant 0 : index
    %18 = vector.load %arg5[%c0_8, %c0_9, %c0_10] : memref<2x8x128xf32, #tpu.memory_space<vmem>>, vector<1x8x128xf32>
    %19 = vector.shape_cast %18 : vector<1x8x128xf32> to vector<8x128xf32>
    %20 = vector.shape_cast %17 : vector<8x128xf32> to vector<1x8x128xf32>
    tpu.vector_store %arg5[%c0_8, %c0_9, %c0_10], %20 {strides = array<i32>} : memref<2x8x128xf32, #tpu.memory_space<vmem>>, vector<1x8x128xf32>,
    %c1 = arith.constant 1 : index
    %c0_11 = arith.constant 0 : index
    %c0_12 = arith.constant 0 : index
    %21 = vector.load %arg5[%c1, %c0_11, %c0_12] : memref<2x8x128xf32, #tpu.memory_space<vmem>>, vector<1x8x128xf32>
    %22 = vector.shape_cast %21 : vector<1x8x128xf32> to vector<8x128xf32>
    %23 = vector.shape_cast %12 : vector<16x128xf32> to vector<2x8x128xf32>
    %cst_13 = arith.constant dense<0.000000e+00> : vector<8x128xf32>
    %24 = vector.multi_reduction <add>, %23, %cst_13 [0] : vector<2x8x128xf32> to vector<8x128xf32>
    %25 = arith.addf %22, %24 : vector<8x128xf32>
    %c1_14 = arith.constant 1 : index
    %c0_15 = arith.constant 0 : index
    %c0_16 = arith.constant 0 : index
    %26 = vector.load %arg5[%c1_14, %c0_15, %c0_16] : memref<2x8x128xf32, #tpu.memory_space<vmem>>, vector<1x8x128xf32>
    %27 = vector.shape_cast %26 : vector<1x8x128xf32> to vector<8x128xf32>
    %28 = vector.shape_cast %25 : vector<8x128xf32> to vector<1x8x128xf32>
    tpu.vector_store %arg5[%c1_14, %c0_15, %c0_16], %28 {strides = array<i32>} : memref<2x8x128xf32, #tpu.memory_space<vmem>>, vector<1x8x128xf32>,
    %c0_i32_17 = arith.constant 0 : i32
    %29 = arith.cmpi eq, %arg1, %c0_i32_17 : i32
    %30 = arith.extui %29 : i1 to i32
    %c0_i32_18 = arith.constant 0 : i32
    %31 = arith.cmpi ne, %30, %c0_i32_18 : i32
    scf.if %31 {
      %c0_19 = arith.constant 0 : index
      %c0_20 = arith.constant 0 : index
      %c0_21 = arith.constant 0 : index
      %32 = vector.load %arg5[%c0_19, %c0_20, %c0_21] : memref<2x8x128xf32, #tpu.memory_space<vmem>>, vector<1x8x128xf32>
      %33 = vector.shape_cast %32 : vector<1x8x128xf32> to vector<8x128xf32>
      %c0_22 = arith.constant 0 : index
      %c0_23 = arith.constant 0 : index
      %c0_24 = arith.constant 0 : index
      %c0_25 = arith.constant 0 : index
      %34 = vector.load %arg4[%c0_22, %c0_23, %c0_24, %c0_25] : memref<1x2x8x128xf32, #tpu.memory_space<vmem>>, vector<1x1x8x128xf32>
      %35 = vector.shape_cast %34 : vector<1x1x8x128xf32> to vector<8x128xf32>
      %36 = vector.shape_cast %33 : vector<8x128xf32> to vector<1x1x8x128xf32>
      tpu.vector_store %arg4[%c0_22, %c0_23, %c0_24, %c0_25], %36 {strides = array<i32>} : memref<1x2x8x128xf32, #tpu.memory_space<vmem>>, vector<1x1x8x128xf32>,
      %c1_26 = arith.constant 1 : index
      %c0_27 = arith.constant 0 : index
      %c0_28 = arith.constant 0 : index
      %37 = vector.load %arg5[%c1_26, %c0_27, %c0_28] : memref<2x8x128xf32, #tpu.memory_space<vmem>>, vector<1x8x128xf32>
      %38 = vector.shape_cast %37 : vector<1x8x128xf32> to vector<8x128xf32>
      %c0_29 = arith.constant 0 : index
      %c1_30 = arith.constant 1 : index
      %c0_31 = arith.constant 0 : index
      %c0_32 = arith.constant 0 : index
      %39 = vector.load %arg4[%c0_29, %c1_30, %c0_31, %c0_32] : memref<1x2x8x128xf32, #tpu.memory_space<vmem>>, vector<1x1x8x128xf32>
      %40 = vector.shape_cast %39 : vector<1x1x8x128xf32> to vector<8x128xf32>
      %41 = vector.shape_cast %38 : vector<8x128xf32> to vector<1x1x8x128xf32>
      tpu.vector_store %arg4[%c0_29, %c1_30, %c0_31, %c0_32], %41 {strides = array<i32>} : memref<1x2x8x128xf32, #tpu.memory_space<vmem>>, vector<1x1x8x128xf32>,
    } else {
    }
    return
  }
  func.func @transform_0(%arg0: i32, %arg1: i32) -> (i32, i32) {
    %c1_i32 = arith.constant 1 : i32
    %0 = arith.muli %arg0, %c1_i32 : i32
    %1 = arith.addi %0, %arg1 : i32
    %c0_i32 = arith.constant 0 : i32
    %2 = arith.minsi %1, %c0_i32 : i32
    %c0_i32_0 = arith.constant 0 : i32
    %c0_i32_1 = arith.constant 0 : i32
    return %2, %c0_i32_0 : i32, i32
  }
  func.func @transform_1(%arg0: i32, %arg1: i32) -> (i32, i32) {
    %c1_i32 = arith.constant 1 : i32
    %0 = arith.muli %arg0, %c1_i32 : i32
    %1 = arith.addi %0, %arg1 : i32
    %c0_i32 = arith.constant 0 : i32
    %2 = arith.minsi %1, %c0_i32 : i32
    %c0_i32_0 = arith.constant 0 : i32
    %c0_i32_1 = arith.constant 0 : i32
    return %2, %c0_i32_0 : i32, i32
  }
  func.func @transform_2(%arg0: i32, %arg1: i32) -> (i32, i32, i32, i32) {
    %c0_i32 = arith.constant 0 : i32
    %c0_i32_0 = arith.constant 0 : i32
    %c0_i32_1 = arith.constant 0 : i32
    %c0_i32_2 = arith.constant 0 : i32
    return %arg0, %c0_i32, %c0_i32_0, %c0_i32_1 : i32, i32, i32, i32
  }
}

</mosaic_0001>

<llo_original>
// kernel: soft_dice_loss.1
$region0: #{soft_dice_loss.1}
  #allocation0 [shape = 'u32[]', space=smem, size = 0x4, offset = 0x4, fixed_abs, tag = 'smem constant byte address 0x4 - core index']
  #allocation1 [shape = 'u32[144,128]{1,0:T(1,128)}', space=vmem, size = 0x12000, scoped, tag = 'internal scratch']
  #allocation2 [shape = 'f32[2,8,128]{2,1,0:T(8,128)}', space=vmem, size = 0x2000, scoped, tag = 'scratch operand']
  %s0 = inlined_call_operand.vmem [shape: f32[16,128], index: 0, kind: input, shape index: {}]
  %s1 = inlined_call_operand.vmem [shape: bf16[16,128], index: 1, kind: input, shape index: {}]
  %s2 = inlined_call_operand.vmem [shape: f32[1,2,8,128], index: 2, kind: output, shape index: {}]
  %s3 = sld [smem:[#allocation0]]
  $region26: #{soft_dice_loss.1} parent=0
    _
  %s5 = ssub.s32 1, %s3
  %s6 = scalar_select 0, %s5, %s3
  // Predicated region
  $region2: #{soft_dice_loss.1} parent=0 // pred_check
    _
  $region3: #{soft_dice_loss.1} parent=0 // pred_check_branch
    %8 = sbr.rel (0) target = $region5
  $region4: #{soft_dice_loss.1} parent=0 // pred_region
    %s9 = sadd.s32 0, 0
    %p10 = scmp.lt.s32.totalorder %s9, 0
    %s11 = scalar_select %p10, %s9, 0
    %s12 = smul.u32 2, %s11
    %p13 = scmp.lt.s32.totalorder %s12, 1
    %s14 = scalar_select %p13, %s12, 1
    %s15 = smul.addr %s14, 8
    %s16 = scalar_lea.vmem %s0, %s15
    %s17 = sadd.s32 0, 0
    %p18 = scmp.lt.s32.totalorder %s17, 0
    %s19 = scalar_select %p18, %s17, 0
    %s20 = smul.u32 2, %s19
  $region5: #{soft_dice_loss.1} parent=0 // pred_fallthru
    _
  // Predicated region
  $region6: #{soft_dice_loss.1} parent=0 // pred_check
    _
  $region7: #{soft_dice_loss.1} parent=0 // pred_check_branch
    %22 = sbr.rel (0) target = $region9
  $region8: #{soft_dice_loss.1} parent=0 // pred_region
    %s23 = sadd.s32 0, 0
    %p24 = scmp.lt.s32.totalorder %s23, 0
    %s25 = scalar_select %p24, %s23, 0
    %s26 = smul.u32 2, %s25
    %p27 = scmp.lt.s32.totalorder %s26, 1
    %s28 = scalar_select %p27, %s26, 1
    %s29 = smul.addr %s28, 4
    %s30 = scalar_lea.vmem %s1, %s29
    %s31 = sadd.s32 0, 0
    %p32 = scmp.lt.s32.totalorder %s31, 0
    %s33 = scalar_select %p32, %s31, 0
    %s34 = smul.u32 2, %s33
  $region9: #{soft_dice_loss.1} parent=0 // pred_fallthru
    _
  %s35 = sadd.s32 0, 0
  %p36 = scmp.lt.s32.totalorder %s35, 0
  %s37 = scalar_select %p36, %s35, 0
  %s38 = smul.u32 2, %s37
  %p39 = scmp.lt.s32.totalorder %s38, 1
  %s40 = scalar_select %p39, %s38, 1
  %s41 = smul.addr %s40, 8
  %s42 = scalar_lea.vmem %s0, %s41
  %s43 = sadd.s32 0, 0
  %p44 = scmp.lt.s32.totalorder %s43, 0
  %s45 = scalar_select %p44, %s43, 0
  %s46 = smul.u32 2, %s45
  %p47 = scmp.lt.s32.totalorder %s46, 1
  %s48 = scalar_select %p47, %s46, 1
  %s49 = smul.addr %s48, 4
  %s50 = scalar_lea.vmem %s1, %s49
  %s51 = sadd.s32 0, 0
  %p52 = scmp.lt.s32.totalorder %s51, 0
  %s53 = scalar_select %p52, %s51, 0
  %s54 = smul.u32 2, %s53
  %p55 = scmp.lt.s32.totalorder %s54, 1
  %s56 = scalar_select %p55, %s54, 1
  %s57 = smul.addr %s56, 8
  %s58 = scalar_lea.vmem %s0, %s57
  %s59 = sadd.s32 0, 0
  %p60 = scmp.lt.s32.totalorder %s59, 0
  %s61 = scalar_select %p60, %s59, 0
  %s62 = smul.u32 2, %s61
  %s63 = sadd.s32 0, 0
  %p64 = scmp.lt.s32.totalorder %s63, 0
  %s65 = scalar_select %p64, %s63, 0
  %s66 = smul.u32 2, %s65
  %p67 = scmp.lt.s32.totalorder %s66, 1
  %s68 = scalar_select %p67, %s66, 1
  %s69 = smul.addr %s68, 4
  %s70 = scalar_lea.vmem %s1, %s69
  %s71 = sadd.s32 0, 0
  %p72 = scmp.lt.s32.totalorder %s71, 0
  %s73 = scalar_select %p72, %s71, 0
  %s74 = smul.u32 2, %s73
  %p75 = scmp.eq.s32.totalorder 0, 0
  // Predicated region
  $region10: #{soft_dice_loss.1} parent=0 // pred_check
    %p76 = pneg %p75
  $region11: #{soft_dice_loss.1} parent=0 // pred_check_branch
    %78 = sbr.rel (%p76) target = $region13
  $region12: #{soft_dice_loss.1} parent=0 // pred_region
    %79 = vst [vmem:[#allocation2] sm:$0xff] 0.0
    %80 = vst [vmem:[#allocation2 + $0x8] sm:$0xff] 0.0
  $region13: #{soft_dice_loss.1} parent=0 // pred_fallthru
    _
  %v81 = vld [vmem:[%s58] sm:$0xff]
  %v82 = vld [vmem:[%s58 + $0x8] sm:$0xff]
  %v83 = vld [vmem:[%s70] sm:$0xf]
  %v84 = vld [vmem:[%s70 + $0x4] sm:$0xf]
  %v85 = vunpack.c.l.bf16 %v83
  %v86 = vunpack.c.l.bf16 %v84
  %v87 = vxor.u32 %v81, 2147483648
  %v88 = vxor.u32 %v82, 2147483648
  %v89 = vmul.f32 %v87, 1.442695
  %v90 = vpow.pop %v89
  %v91 = vmul.f32 %v88, 1.442695
  %v92 = vpow.pop %v91
  %v93 = vadd.f32 %v90, 1.0
  %v94 = vadd.f32 %v92, 1.0
  %v95 = vrcp.pop %v93
  %v96 = vmul.f32 1.0, %v95
  %v97 = vrcp.pop %v94
  %v98 = vmul.f32 1.0, %v97
  %v99 = vmul.f32 %v96, %v85
  %v100 = vmul.f32 %v98, %v86
  %v101 = vadd.f32 %v96, %v85
  %v102 = vadd.f32 %v98, %v86
  %v103 = vld [vmem:[#allocation2] sm:$0xff]
  %v104 = vadd.f32 %v99, %v100
  %v105 = vadd.f32 %v103, %v104
  %106 = vst [vmem:[#allocation2] sm:$0xff] %v105
  %s107 = scalar_lea.vmem [#allocation2], 8
  %v108 = vld [vmem:[%s107] sm:$0xff]
  %v109 = vadd.f32 %v101, %v102
  %v110 = vadd.f32 %v108, %v109
  %111 = vst [vmem:[%s107] sm:$0xff] %v110
  // Predicated region
  $region14: #{soft_dice_loss.1} parent=0 // pred_check
    %p112 = pneg %p75
  $region15: #{soft_dice_loss.1} parent=0 // pred_check_branch
    %114 = sbr.rel (%p112) target = $region17
  $region16: #{soft_dice_loss.1} parent=0 // pred_region
    %v115 = vld [vmem:[#allocation2] sm:$0xff]
    %116 = vst [vmem:[%s2] sm:$0xff] %v115
    %v117 = vld [vmem:[%s107] sm:$0xff]
    %s118 = scalar_lea.vmem %s2, 8
    %119 = vst [vmem:[%s118] sm:$0xff] %v117
  $region17: #{soft_dice_loss.1} parent=0 // pred_fallthru
    _
  // Predicated region
  $region18: #{soft_dice_loss.1} parent=0 // pred_check
    _
  $region19: #{soft_dice_loss.1} parent=0 // pred_check_branch
    %121 = sbr.rel (0) target = $region21
  $region20: #{soft_dice_loss.1} parent=0 // pred_region
    _
  $region21: #{soft_dice_loss.1} parent=0 // pred_fallthru
    _
  // Predicated region
  $region22: #{soft_dice_loss.1} parent=0 // pred_check
    _
  $region23: #{soft_dice_loss.1} parent=0 // pred_check_branch
    %123 = sbr.rel (0) target = $region25
  $region24: #{soft_dice_loss.1} parent=0 // pred_region
    _
  $region25: #{soft_dice_loss.1} parent=0 // pred_fallthru
    _

</llo_original>
